<compile_context>
chip_gen: v7x
topology: tpu7x:2x2x1
jax: 0.10.0
libtpu: 0.0.40
codegen_flags: <defaults>
</compile_context>

<pallas_src>
import functools

import jax
import jax.numpy as jnp
from jax.experimental import pallas as pl
from jax.experimental.pallas import tpu as pltpu


def _round_up(v, m):
    return ((v + m - 1) // m) * m


def _gap_single_kernel(x_ref, o_ref, *, inv_hw):
    # One row tile, full spatial extent: lane-axis reduce in f32, scale, cast.
    s = jnp.sum(x_ref[...], axis=1, keepdims=True, dtype=jnp.float32)
    o_ref[...] = (s * inv_hw).astype(o_ref.dtype)


def _gap_chunked_kernel(x_ref, o_ref, acc_ref, *, inv_hw):
    k = pl.program_id(1)

    @pl.when(k == 0)
    def _():
        acc_ref[...] = jnp.zeros_like(acc_ref)

    # Partial sum over this spatial chunk, accumulated in f32.
    acc_ref[...] += jnp.sum(x_ref[...], axis=1, keepdims=True, dtype=jnp.float32)

    @pl.when(k == pl.num_programs(1) - 1)
    def _():
        o_ref[...] = (acc_ref[...] * inv_hw).astype(o_ref.dtype)


def global_avg_pool2d(x, *, max_block_bytes=6 << 20):
    """Equivalent of F.avg_pool2d(x, kernel_size=x.shape[2:]) for NCHW input."""
    n, c, h, w = x.shape
    rows = n * c
    spatial = h * w
    inv_hw = 1.0 / float(spatial)

    x2d = x.reshape(rows, spatial)

    itemsize = jnp.dtype(x.dtype).itemsize
    sublane = {4: 8, 2: 16, 1: 32}.get(itemsize, 8)

    budget_elems = max(max_block_bytes // itemsize, sublane * 128)
    spatial_lanes = _round_up(spatial, 128)        # VMEM lane footprint per row
    row_cap = min(1024, _round_up(rows, sublane))  # no point tiling past rows

    if sublane * spatial_lanes <= budget_elems:
        # ---------- fast path: whole H*W per block; no padding, no scratch ----
        tile_r = max(sublane, (budget_elems // spatial_lanes) // sublane * sublane)
        tile_r = min(tile_r, row_cap)
        grid = (pl.cdiv(rows, tile_r),)

        out = pl.pallas_call(
            functools.partial(_gap_single_kernel, inv_hw=inv_hw),
            out_shape=jax.ShapeDtypeStruct((rows, 1), x.dtype),
            grid_spec=pltpu.PrefetchScalarGridSpec(
                num_scalar_prefetch=0,
                grid=grid,
                in_specs=[pl.BlockSpec((tile_r, spatial), lambda i: (i, 0))],
                out_specs=pl.BlockSpec((tile_r, 1), lambda i: (i, 0)),
            ),
            compiler_params=pltpu.CompilerParams(
                dimension_semantics=("parallel",),
                vmem_limit_bytes=32 << 20,
            ),
            cost_estimate=pl.CostEstimate(
                flops=rows * spatial,
                transcendentals=0,
                bytes_accessed=rows * spatial * itemsize + rows * itemsize,
            ),
        )(x2d)
    else:
        # ---------- fallback: huge H*W, chunked reduction with f32 accumulator
        max_tile_s = max(128, (budget_elems // sublane) // 128 * 128)
        spat128 = _round_up(spatial, 128)
        kc = pl.cdiv(spat128, max_tile_s)
        tile_s = _round_up(pl.cdiv(spat128, kc), 128)
        spat_pad = kc * tile_s

        tile_r = max(sublane, (budget_elems // tile_s) // sublane * sublane)
        tile_r = min(tile_r, row_cap)

        # Zero padding only along the reduction axis (contributes 0 to sums);
        # rows need no padding (partial row blocks are masked on writeback).
        if spat_pad != spatial:
            x2d = jnp.pad(x2d, ((0, 0), (0, spat_pad - spatial)))

        grid = (pl.cdiv(rows, tile_r), kc)

        out = pl.pallas_call(
            functools.partial(_gap_chunked_kernel, inv_hw=inv_hw),
            out_shape=jax.ShapeDtypeStruct((rows, 1), x.dtype),
            grid_spec=pltpu.PrefetchScalarGridSpec(
                num_scalar_prefetch=0,
                grid=grid,
                in_specs=[pl.BlockSpec((tile_r, tile_s), lambda i, k: (i, k))],
                out_specs=pl.BlockSpec((tile_r, 1), lambda i, k: (i, 0)),
                scratch_shapes=[pltpu.VMEM((tile_r, 1), jnp.float32)],
            ),
            compiler_params=pltpu.CompilerParams(
                # Row tiles independent -> parallel; spatial axis carries the
                # accumulator -> arbitrary (and kept as the last grid axis).
                dimension_semantics=("parallel", "arbitrary"),
                vmem_limit_bytes=32 << 20,
            ),
            cost_estimate=pl.CostEstimate(
                flops=rows * spat_pad,
                transcendentals=0,
                bytes_accessed=rows * spat_pad * itemsize + rows * itemsize,
            ),
        )(x2d)

    return out.reshape(n, c, 1, 1)


if __name__ == "__main__":
    key = jax.random.PRNGKey(0)

    # 1) Small NCHW activation consistent with the module's forward.
    x = jax.random.normal(key, (2, 4, 16, 16), dtype=jnp.float32)
    y = global_avg_pool2d(x)
    jax.block_until_ready(y)
    ref = jnp.mean(x, axis=(2, 3), keepdims=True)
    assert y.shape == (2, 4, 1, 1), y.shape
    assert jnp.allclose(y, ref, atol=1e-6, rtol=1e-6)

    # 2) ResNet-style shape: multiple row tiles, non-128-multiple H*W handled
    #    with zero read amplification on the fast path.
    x2 = jax.random.normal(jax.random.PRNGKey(0), (2, 64, 56, 56), dtype=jnp.float32)
    y2 = global_avg_pool2d(x2)
    jax.block_until_ready(y2)
    ref2 = jnp.mean(x2, axis=(2, 3), keepdims=True)
    assert y2.shape == (2, 64, 1, 1), y2.shape
    assert jnp.allclose(y2, ref2, atol=1e-5, rtol=1e-5)

    # 3) Row count not a multiple of the sublane tile (exercises masked
    #    partial-row writeback, no padding anywhere).
    x3 = jax.random.normal(jax.random.PRNGKey(0), (3, 5, 16, 16), dtype=jnp.float32)
    y3 = global_avg_pool2d(x3)
    jax.block_until_ready(y3)
    ref3 = jnp.mean(x3, axis=(2, 3), keepdims=True)
    assert y3.shape == (3, 5, 1, 1), y3.shape
    assert jnp.allclose(y3, ref3, atol=1e-6, rtol=1e-6)

    # 4) Force the chunked fallback (tiny VMEM budget) to exercise the
    #    accumulator / pl.when path and lane-aligned spatial padding.
    x4 = jax.random.normal(jax.random.PRNGKey(0), (2, 8, 40, 40), dtype=jnp.float32)
    y4 = global_avg_pool2d(x4, max_block_bytes=32 * 1024)
    jax.block_until_ready(y4)
    ref4 = jnp.mean(x4, axis=(2, 3), keepdims=True)
    assert y4.shape == (2, 8, 1, 1), y4.shape
    assert jnp.allclose(y4, ref4, atol=1e-5, rtol=1e-5)

    print("KERNEL_OK")
</pallas_src>

<mosaic_0001>
module attributes {stable_mosaic.version = 11 : i64} {
  func.func @_gap_single_kernel(%arg0: i32, %arg1: memref<8x256xf32, #tpu.memory_space<vmem>>, %arg2: memref<8x1xf32, #tpu.memory_space<vmem>>) attributes {dimension_semantics = [#tpu.dimension_semantics<parallel>], iteration_bounds = array<i64: 1>, scalar_prefetch = 0 : i64, scratch_operands = 0 : i64, tpu.core_type = #tpu.core_type<tc>, window_params = [{transform_indices = @transform_0, window_bounds = array<i64: 8, 256>}, {transform_indices = @transform_1, window_bounds = array<i64: 8, 1>}]} {
    %c0 = arith.constant 0 : index
    %c0_0 = arith.constant 0 : index
    %0 = vector.load %arg1[%c0, %c0_0] : memref<8x256xf32, #tpu.memory_space<vmem>>, vector<8x256xf32>
    %cst = arith.constant dense<0.000000e+00> : vector<8xf32>
    %1 = vector.multi_reduction <add>, %0, %cst [1] : vector<8x256xf32> to vector<8xf32>
    %2 = vector.shape_cast %1 : vector<8xf32> to vector<8x1xf32>
    %cst_1 = arith.constant 3.906250e-03 : f32
    %3 = vector.broadcast %cst_1 : f32 to vector<8x1xf32>
    %4 = arith.mulf %2, %3 : vector<8x1xf32>
    %c0_2 = arith.constant 0 : index
    %c0_3 = arith.constant 0 : index
    %5 = vector.load %arg2[%c0_2, %c0_3] : memref<8x1xf32, #tpu.memory_space<vmem>>, vector<8x1xf32>
    tpu.vector_store %arg2[%c0_2, %c0_3], %4 {strides = array<i32>} : memref<8x1xf32, #tpu.memory_space<vmem>>, vector<8x1xf32>,
    return
  }
  func.func @transform_0(%arg0: i32) -> (i32, i32) {
    %c0_i32 = arith.constant 0 : i32
    %c0_i32_0 = arith.constant 0 : i32
    return %arg0, %c0_i32 : i32, i32
  }
  func.func @transform_1(%arg0: i32) -> (i32, i32) {
    %c0_i32 = arith.constant 0 : i32
    %c0_i32_0 = arith.constant 0 : i32
    return %arg0, %c0_i32 : i32, i32
  }
}

</mosaic_0001>

<llo_original>
// kernel: tpu_custom_call.1
$region0: #{tpu_custom_call.1}
  #allocation0 [shape = 'u32[]', space=smem, size = 0x4, offset = 0x4, fixed_abs, tag = 'smem constant byte address 0x4 - core index']
  #allocation1 [shape = 'u32[144,128]{1,0:T(1,128)}', space=vmem, size = 0x12000, scoped, tag = 'internal scratch']
  %s0 = inlined_call_operand.hbm [shape: f32[8,256], index: 0, kind: input, shape index: {}]
  %s1 = inlined_call_operand.vmem [shape: f32[8,1], index: 1, kind: output, shape index: {}]
  %s2 = sld [smem:[#allocation0]]
  $region18: #{tpu_custom_call.1} parent=0
    _
  %s4 = ssub.s32 1, %s2
  %s5 = scalar_select 0, %s4, %s2
  $region1: #{tpu_custom_call.1} parent=0
    #allocation2 [shape = 'u8[8192]{0}', space=vmem, size = 0x2000, scoped, tag = 'input window, operand 0, single buffered']
    #allocation3 [shape = 's32[1]{0}', space=sflag, size = 0x4, scoped, tag = 'scoped memory for tpu_custom_call.1']
    %6 = vsyncpa [#allocation3], 0
    // Predicated region
    $region2: #{tpu_custom_call.1} parent=1 // pred_check
      _
    $region3: #{tpu_custom_call.1} parent=1 // pred_check_branch
      %8 = sbr.rel (0) target = $region5
    $region4: #{tpu_custom_call.1} parent=1 // pred_region
      %s10 = ssub.s32 256, 256
      %11 = vsyncadd [#allocation3], %s10
      %s13 = sshll.u32 [#allocation2], 4
      %s14 = int_to_ptr.vmem [resolvable:$true] %s13
      %16 = dma.hbm_to_vmem [thread:$0]  %s0, 256, %s14, [#allocation3]
    $region5: #{tpu_custom_call.1} parent=1 // pred_fallthru
      _
    // Predicated region
    $region6: #{tpu_custom_call.1} parent=1 // pred_check
      _
    $region7: #{tpu_custom_call.1} parent=1 // pred_check_branch
      %18 = sbr.rel (0) target = $region9
    $region8: #{tpu_custom_call.1} parent=1 // pred_region
      %19 = dma.done [#allocation3], 256
    $region9: #{tpu_custom_call.1} parent=1 // pred_fallthru
      _
    %v20 = vld [vmem:[#allocation2] sm:$0xff]
    %v21 = vld [vmem:[#allocation2 + $0x8] sm:$0xff]
    %v22 = vadd.f32 %v20, %v21
    %23 = vadd.xlane.f32.xlu0 %v22
    %v24 = vpop.xlane.xlu0 %23
    %v25 = vmul.f32 %v24, 0.00390625
    %vm26 = vcmask 7168
    %27 = vst.msk [vmem:[%s1] sm:$0xff] %vm26, %v25
    // Predicated region
    $region10: #{tpu_custom_call.1} parent=1 // pred_check
      _
    $region11: #{tpu_custom_call.1} parent=1 // pred_check_branch
      %29 = sbr.rel (0) target = $region13
    $region12: #{tpu_custom_call.1} parent=1 // pred_region
      _
    $region13: #{tpu_custom_call.1} parent=1 // pred_fallthru
      _
    // Predicated region
    $region14: #{tpu_custom_call.1} parent=1 // pred_check
      _
    $region15: #{tpu_custom_call.1} parent=1 // pred_check_branch
      %31 = sbr.rel (0) target = $region17
    $region16: #{tpu_custom_call.1} parent=1 // pred_region
      _
    $region17: #{tpu_custom_call.1} parent=1 // pred_fallthru
      _
    %32 = vsyncpa [#allocation3], 1

</llo_original>
